<compile_context>
chip_gen: v6e
topology: v6e:2x2x1
jax: 0.10.0
libtpu: 0.0.40
codegen_flags: <defaults>
</compile_context>

<pallas_src>
import jax
import jax.numpy as jnp
import numpy as np
from jax.experimental import pallas as pl
from jax.experimental.pallas import tpu as pltpu

BN_EPS = 1e-5
LANE = 128


def _round_up(n, m):
    return ((n + m - 1) // m) * m


def _pad2(a, rows, cols, dtype=jnp.float32):
    """Zero-pad a 2-D array up to (rows, cols) and cast."""
    a = jnp.asarray(a, jnp.float32)
    return jnp.pad(a, ((0, rows - a.shape[0]), (0, cols - a.shape[1]))).astype(dtype)


def _pick_vmem_limit():
    """Generation-aware scoped-VMEM budget: ~half of physical VMEM, capped at 100 MiB."""
    try:
        cap = int(pltpu.get_tpu_info().vmem_capacity_bytes)
    except Exception:  # unknown chip / older jax -> conservative (v7x physical)
        cap = 64 * 1024 * 1024
    return int(min(cap // 2, 100 * 1024 * 1024))


# ----------------------------- fused Pallas kernel ------------------------------

def _make_fused_mlp_kernel(n_hidden):
    """Fused kernel for `n_hidden` hidden blocks.

    Ref order: x, (w, gamma_beta) * n_hidden, w_final, b_final, out.
    All refs are whole (pre-padded, lane-dense) arrays resident in VMEM.
    """

    def kernel(*refs):
        x_ref = refs[0]
        o_ref = refs[-1]

        h = x_ref[...]                                             # (T, F0_pad) bf16
        idx = 1
        for _ in range(n_hidden):                                  # static unroll
            w_ref, gb_ref = refs[idx], refs[idx + 1]
            idx += 2
            # Linear (MXU, bf16 in / f32 accumulate).  Hidden bias omitted: it cancels
            # exactly against the BatchNorm mean subtraction below.
            y = jnp.dot(h, w_ref[...], preferred_element_type=jnp.float32)
            # BatchNorm1d, training-mode stats over the fully-resident batch (axis 0),
            # two-pass (centered) variance for numerical stability.
            mean = jnp.mean(y, axis=0, keepdims=True)              # (1, H) f32
            c = y - mean
            var = jnp.mean(c * c, axis=0, keepdims=True)           # biased variance
            gb = gb_ref[...]                                       # (2, H) f32: [gamma; beta]
            scale = gb[0:1, :] * jax.lax.rsqrt(var + BN_EPS)       # rsqrt on EUP
            # BN + ReLU epilogue: one FMA + one max per element (VPU), back to bf16.
            h = jnp.maximum(c * scale + gb[1:2, :], 0.0).astype(jnp.bfloat16)
        # Final Linear (keeps its bias).
        wf_ref, bf_ref = refs[idx], refs[idx + 1]
        o_ref[...] = jnp.dot(h, wf_ref[...], preferred_element_type=jnp.float32) + bf_ref[...]

    return kernel


# ------------------------------ host-side prep -------------------------------

def prepare_params(params, xt_dim, zt_dim):
    """One-time host prep: lane-pad, cast MXU operands to bf16, pack gamma/beta.

    Padding is numerically exact: padded K-rows of W are zero and padded output
    columns have gamma=beta=0, so they stay exactly zero through BN+ReLU.
    """
    hidden = params["hidden"]
    wf, bf = params["final"]
    xt_p = _round_up(xt_dim, LANE)
    zt_p = _round_up(zt_dim, LANE)

    args = []
    flops_per_row = 0
    param_bytes = 0
    in_p = xt_p
    for (w, _b, gamma, beta) in hidden:            # hidden bias dropped (absorbed by BN)
        out_p = _round_up(w.shape[1], LANE)
        w_p = _pad2(w, in_p, out_p, jnp.bfloat16)
        gb_p = jnp.concatenate([_pad2(gamma, 1, out_p), _pad2(beta, 1, out_p)], axis=0)
        args += [w_p, gb_p]
        flops_per_row += 2 * in_p * out_p
        param_bytes += w_p.size * 2 + gb_p.size * 4
        in_p = out_p
    wf_p = _pad2(wf, in_p, zt_p, jnp.bfloat16)
    bf_p = _pad2(bf, 1, zt_p)                      # f32
    args += [wf_p, bf_p]
    flops_per_row += 2 * in_p * zt_p
    param_bytes += wf_p.size * 2 + bf_p.size * 4

    meta = dict(n_hidden=len(hidden), xt_dim=xt_dim, xt_p=xt_p,
                zt_dim=zt_dim, zt_p=zt_p,
                flops_per_row=flops_per_row, param_bytes=param_bytes)
    return tuple(args), meta


def build_forward(meta):
    """Returns a jitted forward(x, prepared_args) -> (T, zt_dim)."""
    kernel = _make_fused_mlp_kernel(meta["n_hidden"])
    xt_p = meta["xt_p"]
    zt_dim, zt_p = meta["zt_dim"], meta["zt_p"]
    vmem_limit = _pick_vmem_limit()

    @jax.jit
    def forward(x, prepared):
        T = x.shape[0]
        # Only x is padded / cast per call; all parameters are pre-padded device arrays.
        x_p = _pad2(x, T, xt_p, jnp.bfloat16)
        cost = pl.CostEstimate(
            flops=T * meta["flops_per_row"],
            transcendentals=meta["n_hidden"] * LANE,          # per-feature rsqrt rows
            bytes_accessed=meta["param_bytes"] + T * (xt_p * 2 + zt_p * 4),
        )
        n_in = 1 + len(prepared)
        out_padded = pl.pallas_call(
            kernel,
            out_shape=jax.ShapeDtypeStruct((T, zt_p), jnp.float32),
            in_specs=[pl.BlockSpec(memory_space=pltpu.MemorySpace.VMEM)] * n_in,
            out_specs=pl.BlockSpec(memory_space=pltpu.MemorySpace.VMEM),
            compiler_params=pltpu.CompilerParams(vmem_limit_bytes=vmem_limit),
            cost_estimate=cost,
        )(x_p, *prepared)
        return out_padded[:, :zt_dim]

    return forward


# --------------------------- model construction -----------------------------

def init_params(key, xt_dim, zt_dim, linear_layer_dims):
    """Deterministic parameter init mirroring the PyTorch module's shapes.

    Linear weights are stored pre-transposed as (in_features, out_features) so the
    kernel computes x @ W + b (== x @ W_pt.T + b).  Hidden biases are created (to
    mirror the module) but are dropped inside the kernel (BN cancels them exactly).
    """
    params = {"hidden": [], "final": None}
    dims = [xt_dim] + list(linear_layer_dims)
    for i in range(len(linear_layer_dims)):
        key, kw, kb = jax.random.split(key, 3)
        fan_in, fan_out = dims[i], dims[i + 1]
        bound = 1.0 / np.sqrt(fan_in)
        w = jax.random.uniform(kw, (fan_in, fan_out), jnp.float32, -bound, bound)
        b = jax.random.uniform(kb, (1, fan_out), jnp.float32, -bound, bound)
        gamma = jnp.ones((1, fan_out), jnp.float32)   # BatchNorm1d weight init
        beta = jnp.zeros((1, fan_out), jnp.float32)   # BatchNorm1d bias init
        params["hidden"].append((w, b, gamma, beta))
    key, kw, kb = jax.random.split(key, 3)
    fan_in = linear_layer_dims[-1]
    bound = 1.0 / np.sqrt(fan_in)
    w = jax.random.uniform(kw, (fan_in, zt_dim), jnp.float32, -bound, bound)
    b = jax.random.uniform(kb, (1, zt_dim), jnp.float32, -bound, bound)
    params["final"] = (w, b)
    return params


# ------------------------------- references ---------------------------------

def reference_forward(x, params):
    """Pure-JAX f32 reference matching the PyTorch module math (training-mode BN, bias kept)."""
    h = x.astype(jnp.float32)
    for (w, b, gamma, beta) in params["hidden"]:
        y = h @ w + b
        mean = jnp.mean(y, axis=0, keepdims=True)
        var = jnp.mean((y - mean) ** 2, axis=0, keepdims=True)
        y = (y - mean) / jnp.sqrt(var + BN_EPS) * gamma + beta
        h = jnp.maximum(y, 0.0)
    w, b = params["final"]
    return h @ w + b


def reference_forward_bf16(x, params):
    """Mirror of the kernel's numerics (bf16 MXU inputs, f32 stats, hidden bias dropped)."""
    h = x.astype(jnp.bfloat16)
    for (w, _b, gamma, beta) in params["hidden"]:
        y = jnp.dot(h, w.astype(jnp.bfloat16), preferred_element_type=jnp.float32)
        mean = jnp.mean(y, axis=0, keepdims=True)
        c = y - mean
        var = jnp.mean(c * c, axis=0, keepdims=True)
        h = jnp.maximum(c * (gamma * jax.lax.rsqrt(var + BN_EPS)) + beta, 0.0).astype(jnp.bfloat16)
    w, b = params["final"]
    return jnp.dot(h, w.astype(jnp.bfloat16), preferred_element_type=jnp.float32) + b


# ---------------------------------- main -------------------------------------

if __name__ == "__main__":
    # Module hyperparameters (small, consistent with forward: x is T x xt_dim).
    T = 8
    xt_dim = 16
    zt_dim = 8
    linear_layer_dims = [32, 32]

    key = jax.random.PRNGKey(0)
    key, kx = jax.random.split(key)
    x = jax.random.normal(kx, (T, xt_dim), jnp.float32)

    params = init_params(key, xt_dim, zt_dim, linear_layer_dims)
    prepared, meta = prepare_params(params, xt_dim, zt_dim)   # one-time padding/packing
    forward = build_forward(meta)

    out = jax.block_until_ready(forward(x, prepared))
    assert out.shape == (T, zt_dim)

    # Tight check vs a pure-JAX mirror of the kernel numerics (bf16 MXU, f32 stats).
    ref_bf16 = reference_forward_bf16(x, params)
    np.testing.assert_allclose(np.asarray(out), np.asarray(ref_bf16), rtol=2e-3, atol=2e-3)

    # Semantic check vs the exact f32 PyTorch-module math (difference = bf16 matmul rounding).
    ref_f32 = reference_forward(x, params)
    np.testing.assert_allclose(np.asarray(out), np.asarray(ref_f32), rtol=5e-2, atol=5e-2)

    print("KERNEL_OK")
</pallas_src>

<mosaic_0001>
module attributes {stable_mosaic.version = 11 : i64} {
  func.func @kernel(%arg0: memref<8x128xbf16, #tpu.memory_space<vmem>>, %arg1: memref<128x128xbf16, #tpu.memory_space<vmem>>, %arg2: memref<2x128xf32, #tpu.memory_space<vmem>>, %arg3: memref<128x128xbf16, #tpu.memory_space<vmem>>, %arg4: memref<2x128xf32, #tpu.memory_space<vmem>>, %arg5: memref<128x128xbf16, #tpu.memory_space<vmem>>, %arg6: memref<1x128xf32, #tpu.memory_space<vmem>>, %arg7: memref<8x128xf32, #tpu.memory_space<vmem>>) attributes {dimension_semantics = [], scalar_prefetch = 0 : i64, scratch_operands = 0 : i64, tpu.core_type = #tpu.core_type<tc>} {
    %c0 = arith.constant 0 : index
    %c0_0 = arith.constant 0 : index
    %0 = vector.load %arg0[%c0, %c0_0] : memref<8x128xbf16, #tpu.memory_space<vmem>>, vector<8x128xbf16>
    %c0_1 = arith.constant 0 : index
    %c0_2 = arith.constant 0 : index
    %1 = vector.load %arg1[%c0_1, %c0_2] : memref<128x128xbf16, #tpu.memory_space<vmem>>, vector<128x128xbf16>
    %cst = arith.constant dense<0.000000e+00> : vector<8x128xf32>
    %2 = tpu.matmul %0, %1, %cst {dimension_numbers = #tpu.dot_dimension_numbers<[1], [0], [0], [1], [0, 0, 1, 1], [], []>} : vector<8x128xbf16>, vector<128x128xbf16>, vector<8x128xf32> -> vector<8x128xf32>
    %cst_3 = arith.constant dense<0.000000e+00> : vector<128xf32>
    %3 = vector.multi_reduction <add>, %2, %cst_3 [0] : vector<8x128xf32> to vector<128xf32>
    %4 = vector.shape_cast %3 : vector<128xf32> to vector<1x128xf32>
    %cst_4 = arith.constant 8.000000e+00 : f32
    %5 = vector.broadcast %cst_4 : f32 to vector<1x128xf32>
    %6 = arith.divf %4, %5 : vector<1x128xf32>
    %7 = vector.broadcast %6 : vector<1x128xf32> to vector<8x128xf32>
    %8 = arith.subf %2, %7 : vector<8x128xf32>
    %9 = arith.mulf %8, %8 : vector<8x128xf32>
    %cst_5 = arith.constant dense<0.000000e+00> : vector<128xf32>
    %10 = vector.multi_reduction <add>, %9, %cst_5 [0] : vector<8x128xf32> to vector<128xf32>
    %11 = vector.shape_cast %10 : vector<128xf32> to vector<1x128xf32>
    %cst_6 = arith.constant 8.000000e+00 : f32
    %12 = vector.broadcast %cst_6 : f32 to vector<1x128xf32>
    %13 = arith.divf %11, %12 : vector<1x128xf32>
    %c0_7 = arith.constant 0 : index
    %c0_8 = arith.constant 0 : index
    %14 = vector.load %arg2[%c0_7, %c0_8] : memref<2x128xf32, #tpu.memory_space<vmem>>, vector<2x128xf32>
    %15 = vector.extract_strided_slice %14 {offsets = [0, 0], sizes = [1, 128], strides = [1, 1]} : vector<2x128xf32> to vector<1x128xf32>
    %cst_9 = arith.constant 9.99999974E-6 : f32
    %16 = vector.broadcast %cst_9 : f32 to vector<1x128xf32>
    %17 = arith.addf %13, %16 : vector<1x128xf32>
    %18 = math.rsqrt %17 : vector<1x128xf32>
    %19 = arith.mulf %15, %18 : vector<1x128xf32>
    %20 = vector.broadcast %19 : vector<1x128xf32> to vector<8x128xf32>
    %21 = arith.mulf %8, %20 : vector<8x128xf32>
    %22 = vector.extract_strided_slice %14 {offsets = [1, 0], sizes = [1, 128], strides = [1, 1]} : vector<2x128xf32> to vector<1x128xf32>
    %23 = vector.broadcast %22 : vector<1x128xf32> to vector<8x128xf32>
    %24 = arith.addf %21, %23 : vector<8x128xf32>
    %cst_10 = arith.constant 0.000000e+00 : f32
    %25 = vector.broadcast %cst_10 : f32 to vector<8x128xf32>
    %26 = arith.maximumf %24, %25 : vector<8x128xf32>
    %27 = arith.truncf %26 : vector<8x128xf32> to vector<8x128xbf16>
    %c0_11 = arith.constant 0 : index
    %c0_12 = arith.constant 0 : index
    %28 = vector.load %arg3[%c0_11, %c0_12] : memref<128x128xbf16, #tpu.memory_space<vmem>>, vector<128x128xbf16>
    %cst_13 = arith.constant dense<0.000000e+00> : vector<8x128xf32>
    %29 = tpu.matmul %27, %28, %cst_13 {dimension_numbers = #tpu.dot_dimension_numbers<[1], [0], [0], [1], [0, 0, 1, 1], [], []>} : vector<8x128xbf16>, vector<128x128xbf16>, vector<8x128xf32> -> vector<8x128xf32>
    %cst_14 = arith.constant dense<0.000000e+00> : vector<128xf32>
    %30 = vector.multi_reduction <add>, %29, %cst_14 [0] : vector<8x128xf32> to vector<128xf32>
    %31 = vector.shape_cast %30 : vector<128xf32> to vector<1x128xf32>
    %cst_15 = arith.constant 8.000000e+00 : f32
    %32 = vector.broadcast %cst_15 : f32 to vector<1x128xf32>
    %33 = arith.divf %31, %32 : vector<1x128xf32>
    %34 = vector.broadcast %33 : vector<1x128xf32> to vector<8x128xf32>
    %35 = arith.subf %29, %34 : vector<8x128xf32>
    %36 = arith.mulf %35, %35 : vector<8x128xf32>
    %cst_16 = arith.constant dense<0.000000e+00> : vector<128xf32>
    %37 = vector.multi_reduction <add>, %36, %cst_16 [0] : vector<8x128xf32> to vector<128xf32>
    %38 = vector.shape_cast %37 : vector<128xf32> to vector<1x128xf32>
    %cst_17 = arith.constant 8.000000e+00 : f32
    %39 = vector.broadcast %cst_17 : f32 to vector<1x128xf32>
    %40 = arith.divf %38, %39 : vector<1x128xf32>
    %c0_18 = arith.constant 0 : index
    %c0_19 = arith.constant 0 : index
    %41 = vector.load %arg4[%c0_18, %c0_19] : memref<2x128xf32, #tpu.memory_space<vmem>>, vector<2x128xf32>
    %42 = vector.extract_strided_slice %41 {offsets = [0, 0], sizes = [1, 128], strides = [1, 1]} : vector<2x128xf32> to vector<1x128xf32>
    %cst_20 = arith.constant 9.99999974E-6 : f32
    %43 = vector.broadcast %cst_20 : f32 to vector<1x128xf32>
    %44 = arith.addf %40, %43 : vector<1x128xf32>
    %45 = math.rsqrt %44 : vector<1x128xf32>
    %46 = arith.mulf %42, %45 : vector<1x128xf32>
    %47 = vector.broadcast %46 : vector<1x128xf32> to vector<8x128xf32>
    %48 = arith.mulf %35, %47 : vector<8x128xf32>
    %49 = vector.extract_strided_slice %41 {offsets = [1, 0], sizes = [1, 128], strides = [1, 1]} : vector<2x128xf32> to vector<1x128xf32>
    %50 = vector.broadcast %49 : vector<1x128xf32> to vector<8x128xf32>
    %51 = arith.addf %48, %50 : vector<8x128xf32>
    %cst_21 = arith.constant 0.000000e+00 : f32
    %52 = vector.broadcast %cst_21 : f32 to vector<8x128xf32>
    %53 = arith.maximumf %51, %52 : vector<8x128xf32>
    %54 = arith.truncf %53 : vector<8x128xf32> to vector<8x128xbf16>
    %c0_22 = arith.constant 0 : index
    %c0_23 = arith.constant 0 : index
    %55 = vector.load %arg5[%c0_22, %c0_23] : memref<128x128xbf16, #tpu.memory_space<vmem>>, vector<128x128xbf16>
    %cst_24 = arith.constant dense<0.000000e+00> : vector<8x128xf32>
    %56 = tpu.matmul %54, %55, %cst_24 {dimension_numbers = #tpu.dot_dimension_numbers<[1], [0], [0], [1], [0, 0, 1, 1], [], []>} : vector<8x128xbf16>, vector<128x128xbf16>, vector<8x128xf32> -> vector<8x128xf32>
    %c0_25 = arith.constant 0 : index
    %c0_26 = arith.constant 0 : index
    %57 = vector.load %arg6[%c0_25, %c0_26] : memref<1x128xf32, #tpu.memory_space<vmem>>, vector<1x128xf32>
    %58 = vector.broadcast %57 : vector<1x128xf32> to vector<8x128xf32>
    %59 = arith.addf %56, %58 : vector<8x128xf32>
    %c0_27 = arith.constant 0 : index
    %c0_28 = arith.constant 0 : index
    %60 = vector.load %arg7[%c0_27, %c0_28] : memref<8x128xf32, #tpu.memory_space<vmem>>, vector<8x128xf32>
    tpu.vector_store %arg7[%c0_27, %c0_28], %59 {strides = array<i32>} : memref<8x128xf32, #tpu.memory_space<vmem>>, vector<8x128xf32>,
    return
  }
}

</mosaic_0001>

<llo_original>
// kernel: forward.1
$region0: #{forward.1}
  #allocation0 [shape = 'u32[]', space=smem, size = 0x4, offset = 0x4, fixed_abs, tag = 'smem constant byte address 0x4 - core index']
  #allocation1 [shape = 'u32[144,128]{1,0:T(1,128)}', space=vmem, size = 0x12000, scoped, tag = 'internal scratch']
  %s0 = inlined_call_operand.vmem [shape: bf16[8,128], index: 0, kind: input, shape index: {}]
  %s1 = inlined_call_operand.hbm [shape: bf16[128,128], index: 1, kind: input, shape index: {}]
  %s2 = inlined_call_operand.vmem [shape: f32[2,128], index: 2, kind: input, shape index: {}]
  %s3 = inlined_call_operand.hbm [shape: bf16[128,128], index: 3, kind: input, shape index: {}]
  %s4 = inlined_call_operand.vmem [shape: f32[2,128], index: 4, kind: input, shape index: {}]
  %s5 = inlined_call_operand.hbm [shape: bf16[128,128], index: 5, kind: input, shape index: {}]
  %s6 = inlined_call_operand.vmem [shape: f32[1,128], index: 6, kind: input, shape index: {}]
  %s7 = inlined_call_operand.hbm [shape: f32[8,128], index: 7, kind: output, shape index: {}]
  %s8 = sld [smem:[#allocation0]]
  $region50: #{forward.1} parent=0
    _
  %s10 = ssub.s32 1, %s8
  %s11 = scalar_select 0, %s10, %s8
  $region1: #{forward.1} parent=0
    #allocation2 [shape = 'u8[32768]{0}', space=vmem, size = 0x8000, scoped, tag = 'input window, operand 1, single buffered']
    #allocation3 [shape = 's32[1]{0}', space=sflag, size = 0x4, scoped, tag = 'scoped memory for forward.1']
    #allocation4 [shape = 's32[1]{0}', space=sflag, size = 0x4, scoped, tag = 'scoped memory for forward.1']
    #allocation5 [shape = 'u8[32768]{0}', space=vmem, size = 0x8000, scoped, tag = 'input window, operand 3, single buffered']
    #allocation6 [shape = 's32[1]{0}', space=sflag, size = 0x4, scoped, tag = 'scoped memory for forward.1']
    #allocation7 [shape = 'u8[32768]{0}', space=vmem, size = 0x8000, scoped, tag = 'input window, operand 5, single buffered']
    #allocation8 [shape = 'u8[4096]{0}', space=vmem, size = 0x1000, scoped, tag = 'output window, operand 0, single buffered']
    %12 = vsyncpa [#allocation3], 0
    %13 = vsyncpa [#allocation6], 0
    %14 = vsyncpa [#allocation4], 0
    // Predicated region
    $region2: #{forward.1} parent=1 // pred_check
      _
    $region3: #{forward.1} parent=1 // pred_check_branch
      %16 = sbr.rel (0) target = $region5
    $region4: #{forward.1} parent=1 // pred_region
      _
    $region5: #{forward.1} parent=1 // pred_fallthru
      _
    // Predicated region
    $region6: #{forward.1} parent=1 // pred_check
      _
    $region7: #{forward.1} parent=1 // pred_check_branch
      %18 = sbr.rel (0) target = $region9
    $region8: #{forward.1} parent=1 // pred_region
      %s20 = ssub.s32 1024, 1024
      %21 = vsyncadd [#allocation3], %s20
      %s22 = sshll.u32 [#allocation2], 4
      %s23 = int_to_ptr.vmem [resolvable:$true] %s22
      %28 = dma.hbm_to_vmem [thread:$0]  %s1, 1024, %s23, [#allocation3], 64, 64, 4
    $region9: #{forward.1} parent=1 // pred_fallthru
      _
    // Predicated region
    $region10: #{forward.1} parent=1 // pred_check
      _
    $region11: #{forward.1} parent=1 // pred_check_branch
      %30 = sbr.rel (0) target = $region13
    $region12: #{forward.1} parent=1 // pred_region
      _
    $region13: #{forward.1} parent=1 // pred_fallthru
      _
    // Predicated region
    $region14: #{forward.1} parent=1 // pred_check
      _
    $region15: #{forward.1} parent=1 // pred_check_branch
      %32 = sbr.rel (0) target = $region17
    $region16: #{forward.1} parent=1 // pred_region
      %s34 = ssub.s32 1024, 1024
      %35 = vsyncadd [#allocation6], %s34
      %s36 = sshll.u32 [#allocation5], 4
      %s37 = int_to_ptr.vmem [resolvable:$true] %s36
      %42 = dma.hbm_to_vmem [thread:$0]  %s3, 1024, %s37, [#allocation6], 64, 64, 4
    $region17: #{forward.1} parent=1 // pred_fallthru
      _
    // Predicated region
    $region18: #{forward.1} parent=1 // pred_check
      _
    $region19: #{forward.1} parent=1 // pred_check_branch
      %44 = sbr.rel (0) target = $region21
    $region20: #{forward.1} parent=1 // pred_region
      _
    $region21: #{forward.1} parent=1 // pred_fallthru
      _
    // Predicated region
    $region22: #{forward.1} parent=1 // pred_check
      _
    $region23: #{forward.1} parent=1 // pred_check_branch
      %46 = sbr.rel (0) target = $region25
    $region24: #{forward.1} parent=1 // pred_region
      %s48 = ssub.s32 1024, 1024
      %49 = vsyncadd [#allocation6], %s48
      %s50 = sshll.u32 [#allocation7], 4
      %s51 = int_to_ptr.vmem [resolvable:$true] %s50
      %56 = dma.hbm_to_vmem [thread:$0]  %s5, 1024, %s51, [#allocation6], 64, 64, 4
    $region25: #{forward.1} parent=1 // pred_fallthru
      _
    // Predicated region
    $region26: #{forward.1} parent=1 // pred_check
      _
    $region27: #{forward.1} parent=1 // pred_check_branch
      %58 = sbr.rel (0) target = $region29
    $region28: #{forward.1} parent=1 // pred_region
      _
    $region29: #{forward.1} parent=1 // pred_fallthru
      _
    // Predicated region
    $region30: #{forward.1} parent=1 // pred_check
      _
    $region31: #{forward.1} parent=1 // pred_check_branch
      %60 = sbr.rel (0) target = $region33
    $region32: #{forward.1} parent=1 // pred_region
      %61 = dma.done [#allocation3], 1024
    $region33: #{forward.1} parent=1 // pred_fallthru
      _
    // Predicated region
    $region34: #{forward.1} parent=1 // pred_check
      _
    $region35: #{forward.1} parent=1 // pred_check_branch
      %63 = sbr.rel (0) target = $region37
    $region36: #{forward.1} parent=1 // pred_region
      %64 = dma.done [#allocation6], 1024
    $region37: #{forward.1} parent=1 // pred_fallthru
      _
    // Predicated region
    $region38: #{forward.1} parent=1 // pred_check
      _
    $region39: #{forward.1} parent=1 // pred_check_branch
      %66 = sbr.rel (0) target = $region41
    $region40: #{forward.1} parent=1 // pred_region
      %67 = dma.done [#allocation6], 1024
    $region41: #{forward.1} parent=1 // pred_fallthru
      _
    %v69 = vld [vmem:[%s0] sm:$0xf]
    %v70 = vld [vmem:[#allocation2] sm:$0xf]
    %v71 = vld [vmem:[#allocation2 + $0x4] sm:$0xf]
    %v72 = vld [vmem:[#allocation2 + $0x8] sm:$0xf]
    %v73 = vld [vmem:[#allocation2 + $0xc] sm:$0xf]
    %v74 = vld [vmem:[#allocation2 + $0x10] sm:$0xf]
    %v75 = vld [vmem:[#allocation2 + $0x14] sm:$0xf]
    %v76 = vld [vmem:[#allocation2 + $0x18] sm:$0xf]
    %v77 = vld [vmem:[#allocation2 + $0x1c] sm:$0xf]
    %v78 = vld [vmem:[#allocation2 + $0x20] sm:$0xf]
    %v79 = vld [vmem:[#allocation2 + $0x24] sm:$0xf]
    %v80 = vld [vmem:[#allocation2 + $0x28] sm:$0xf]
    %v81 = vld [vmem:[#allocation2 + $0x2c] sm:$0xf]
    %v82 = vld [vmem:[#allocation2 + $0x30] sm:$0xf]
    %v83 = vld [vmem:[#allocation2 + $0x34] sm:$0xf]
    %v84 = vld [vmem:[#allocation2 + $0x38] sm:$0xf]
    %v85 = vld [vmem:[#allocation2 + $0x3c] sm:$0xf]
    %v102 = vunpack.c.l.b16 %v70
    %v103 = vunpack.c.l.b16 %v71
    %v104 = vunpack.c.l.b16 %v72
    %v105 = vunpack.c.l.b16 %v73
    %v106 = vunpack.c.l.b16 %v74
    %v107 = vunpack.c.l.b16 %v75
    %v108 = vunpack.c.l.b16 %v76
    %v109 = vunpack.c.l.b16 %v77
    %v110 = vunpack.c.l.b16 %v78
    %v111 = vunpack.c.l.b16 %v79
    %v112 = vunpack.c.l.b16 %v80
    %v113 = vunpack.c.l.b16 %v81
    %v114 = vunpack.c.l.b16 %v82
    %v115 = vunpack.c.l.b16 %v83
    %v116 = vunpack.c.l.b16 %v84
    %v117 = vunpack.c.l.b16 %v85
    %v118 = vpack.c.b16 %v103, %v102
    %v119 = vpack.c.b16 %v105, %v104
    %v120 = vpack.c.b16 %v107, %v106
    %v121 = vpack.c.b16 %v109, %v108
    %v122 = vpack.c.b16 %v111, %v110
    %v123 = vpack.c.b16 %v113, %v112
    %v124 = vpack.c.b16 %v115, %v114
    %v125 = vpack.c.b16 %v117, %v116
    %134 = vmatprep.subr.bf16.mxu0 0
    %135 = vmatpush1.bf16.msra.mxu0 %v125
    %136 = vmatprep.subr.bf16.mxu0 0
    %137 = vmatpush1.bf16.msra.mxu0 %v124
    %138 = vmatprep.subr.bf16.mxu0 0
    %139 = vmatpush1.bf16.msra.mxu0 %v123
    %140 = vmatprep.subr.bf16.mxu0 0
    %141 = vmatpush1.bf16.msra.mxu0 %v122
    %142 = vmatprep.subr.bf16.mxu0 0
    %143 = vmatpush1.bf16.msra.mxu0 %v121
    %144 = vmatprep.subr.bf16.mxu0 0
    %145 = vmatpush1.bf16.msra.mxu0 %v120
    %146 = vmatprep.subr.bf16.mxu0 0
    %147 = vmatpush1.bf16.msra.mxu0 %v119
    %148 = vmatprep.subr.bf16.mxu0 0
    %149 = vmatpush1.bf16.msra.mxu0 %v118
    %150 = vmatprep.subr.bf16.mxu0 0
    %151 = vmatpush2.bf16.msra.mxu0 0
    %152 = vmatprep.subr.bf16.mxu0 0
    %153 = vmatpush2.bf16.msra.mxu0 0
    %154 = vmatprep.subr.bf16.mxu0 0
    %155 = vmatpush2.bf16.msra.mxu0 0
    %156 = vmatprep.subr.bf16.mxu0 0
    %157 = vmatpush2.bf16.msra.mxu0 0
    %158 = vmatprep.subr.bf16.mxu0 0
    %159 = vmatpush2.bf16.msra.mxu0 0
    %160 = vmatprep.subr.bf16.mxu0 0
    %161 = vmatpush2.bf16.msra.mxu0 0
    %162 = vmatprep.subr.bf16.mxu0 0
    %163 = vmatpush2.bf16.msra.mxu0 0
    %164 = vmatprep.subr.bf16.mxu0 0
    %165 = vmatpush2.bf16.msra.mxu0 0
    %166 = vmatprep.mubr.bf16.mxu0 0
    %167 = vmatmul.mubr.bf16.gmra.mxu0 %v69
    %v168 = vpop.f32.mrf.mxu0
    %v169 = vadd.f32 0.0, %v168
    %v170 = vpop.f32.mrf.mxu0
    %v171 = vpop.f32.mrf.mxu0
    %v172 = vpop.f32.mrf.mxu0
    %173 = vdwg.mxu0
    %v174 = vrot.slane %v169, 4
    %v175 = vadd.f32 %v169, %v174
    %v176 = vrot.slane %v175, 2
    %v177 = vadd.f32 %v175, %v176
    %v178 = vrot.slane %v177, 1
    %v179 = vadd.f32 %v177, %v178
    %v180 = vrcp.pop 8.0
    %v181 = vmul.f32 %v179, %v180
    %v182 = vsub.f32 %v169, %v181
    %v183 = vmul.f32 %v182, %v182
    %v184 = vrot.slane %v183, 4
    %v185 = vadd.f32 %v183, %v184
    %v186 = vrot.slane %v185, 2
    %v187 = vadd.f32 %v185, %v186
    %v188 = vrot.slane %v187, 1
    %v189 = vadd.f32 %v187, %v188
    %v190 = vmul.f32 %v189, %v180
    %v191 = vld [vmem:[%s2] sm:$0x3]
    %v192 = vadd.f32 %v190, 1e-05
    %v193 = vrsqrt.pop %v192
    %v194 = vmul.f32 %v191, %v193
    %v195 = vlaneseq
    %v196 = vshrl.u32 %v195, 7
    %v197 = vsub.s32 0, %v196
    %v198 = vrot.slane %v194, %v197
    %v199 = vmul.f32 %v182, %v198
    %v200 = vlaneseq
    %v201 = vshrl.u32 %v200, 7
    %v202 = vsub.s32 1, %v201
    %v203 = vrot.slane %v191, %v202
    %v204 = vadd.f32 %v199, %v203
    %v205 = vmax.f32 %v204, 0.0
    %v206 = vpack.c.bf16 %v205, %v205
    %v207 = vld [vmem:[#allocation5] sm:$0xf]
    %v208 = vld [vmem:[#allocation5 + $0x4] sm:$0xf]
    %v209 = vld [vmem:[#allocation5 + $0x8] sm:$0xf]
    %v210 = vld [vmem:[#allocation5 + $0xc] sm:$0xf]
    %v211 = vld [vmem:[#allocation5 + $0x10] sm:$0xf]
    %v212 = vld [vmem:[#allocation5 + $0x14] sm:$0xf]
    %v213 = vld [vmem:[#allocation5 + $0x18] sm:$0xf]
    %v214 = vld [vmem:[#allocation5 + $0x1c] sm:$0xf]
    %v215 = vld [vmem:[#allocation5 + $0x20] sm:$0xf]
    %v216 = vld [vmem:[#allocation5 + $0x24] sm:$0xf]
    %v217 = vld [vmem:[#allocation5 + $0x28] sm:$0xf]
    %v218 = vld [vmem:[#allocation5 + $0x2c] sm:$0xf]
    %v219 = vld [vmem:[#allocation5 + $0x30] sm:$0xf]
    %v220 = vld [vmem:[#allocation5 + $0x34] sm:$0xf]
    %v221 = vld [vmem:[#allocation5 + $0x38] sm:$0xf]
    %v222 = vld [vmem:[#allocation5 + $0x3c] sm:$0xf]
    %v239 = vunpack.c.l.b16 %v207
    %v240 = vunpack.c.l.b16 %v208
    %v241 = vunpack.c.l.b16 %v209
    %v242 = vunpack.c.l.b16 %v210
    %v243 = vunpack.c.l.b16 %v211
    %v244 = vunpack.c.l.b16 %v212
    %v245 = vunpack.c.l.b16 %v213
    %v246 = vunpack.c.l.b16 %v214
    %v247 = vunpack.c.l.b16 %v215
    %v248 = vunpack.c.l.b16 %v216
    %v249 = vunpack.c.l.b16 %v217
    %v250 = vunpack.c.l.b16 %v218
    %v251 = vunpack.c.l.b16 %v219
    %v252 = vunpack.c.l.b16 %v220
    %v253 = vunpack.c.l.b16 %v221
    %v254 = vunpack.c.l.b16 %v222
    %v255 = vpack.c.b16 %v240, %v239
    %v256 = vpack.c.b16 %v242, %v241
    %v257 = vpack.c.b16 %v244, %v243
    %v258 = vpack.c.b16 %v246, %v245
    %v259 = vpack.c.b16 %v248, %v247
    %v260 = vpack.c.b16 %v250, %v249
    %v261 = vpack.c.b16 %v252, %v251
    %v262 = vpack.c.b16 %v254, %v253
    %271 = vmatprep.subr.bf16.mxu0 0
    %272 = vmatpush1.bf16.msra.mxu0 %v262
    %273 = vmatprep.subr.bf16.mxu0 0
    %274 = vmatpush1.bf16.msra.mxu0 %v261
    %275 = vmatprep.subr.bf16.mxu0 0
    %276 = vmatpush1.bf16.msra.mxu0 %v260
    %277 = vmatprep.subr.bf16.mxu0 0
    %278 = vmatpush1.bf16.msra.mxu0 %v259
    %279 = vmatprep.subr.bf16.mxu0 0
    %280 = vmatpush1.bf16.msra.mxu0 %v258
    %281 = vmatprep.subr.bf16.mxu0 0
    %282 = vmatpush1.bf16.msra.mxu0 %v257
    %283 = vmatprep.subr.bf16.mxu0 0
    %284 = vmatpush1.bf16.msra.mxu0 %v256
    %285 = vmatprep.subr.bf16.mxu0 0
    %286 = vmatpush1.bf16.msra.mxu0 %v255
    %287 = vmatprep.subr.bf16.mxu0 0
    %288 = vmatpush2.bf16.msra.mxu0 0
    %289 = vmatprep.subr.bf16.mxu0 0
    %290 = vmatpush2.bf16.msra.mxu0 0
    %291 = vmatprep.subr.bf16.mxu0 0
    %292 = vmatpush2.bf16.msra.mxu0 0
    %293 = vmatprep.subr.bf16.mxu0 0
    %294 = vmatpush2.bf16.msra.mxu0 0
    %295 = vmatprep.subr.bf16.mxu0 0
    %296 = vmatpush2.bf16.msra.mxu0 0
    %297 = vmatprep.subr.bf16.mxu0 0
    %298 = vmatpush2.bf16.msra.mxu0 0
    %299 = vmatprep.subr.bf16.mxu0 0
    %300 = vmatpush2.bf16.msra.mxu0 0
    %301 = vmatprep.subr.bf16.mxu0 0
    %302 = vmatpush2.bf16.msra.mxu0 0
    %303 = vmatprep.mubr.bf16.mxu0 0
    %304 = vmatmul.mubr.bf16.gmra.mxu0 %v206
    %v305 = vpop.f32.mrf.mxu0
    %v306 = vadd.f32 0.0, %v305
    %v307 = vpop.f32.mrf.mxu0
    %v308 = vpop.f32.mrf.mxu0
    %v309 = vpop.f32.mrf.mxu0
    %310 = vdwg.mxu0
    %v311 = vrot.slane %v306, 4
    %v312 = vadd.f32 %v306, %v311
    %v313 = vrot.slane %v312, 2
    %v314 = vadd.f32 %v312, %v313
    %v315 = vrot.slane %v314, 1
    %v316 = vadd.f32 %v314, %v315
    %v317 = vmul.f32 %v316, %v180
    %v318 = vsub.f32 %v306, %v317
    %v319 = vmul.f32 %v318, %v318
    %v320 = vrot.slane %v319, 4
    %v321 = vadd.f32 %v319, %v320
    %v322 = vrot.slane %v321, 2
    %v323 = vadd.f32 %v321, %v322
    %v324 = vrot.slane %v323, 1
    %v325 = vadd.f32 %v323, %v324
    %v326 = vmul.f32 %v325, %v180
    %v327 = vld [vmem:[%s4] sm:$0x3]
    %v328 = vadd.f32 %v326, 1e-05
    %v329 = vrsqrt.pop %v328
    %v330 = vmul.f32 %v327, %v329
    %v331 = vlaneseq
    %v332 = vshrl.u32 %v331, 7
    %v333 = vsub.s32 0, %v332
    %v334 = vrot.slane %v330, %v333
    %v335 = vmul.f32 %v318, %v334
    %v336 = vlaneseq
    %v337 = vshrl.u32 %v336, 7
    %v338 = vsub.s32 1, %v337
    %v339 = vrot.slane %v327, %v338
    %v340 = vadd.f32 %v335, %v339
    %v341 = vmax.f32 %v340, 0.0
    %v342 = vpack.c.bf16 %v341, %v341
    %v343 = vld [vmem:[#allocation7] sm:$0xf]
    %v344 = vld [vmem:[#allocation7 + $0x4] sm:$0xf]
    %v345 = vld [vmem:[#allocation7 + $0x8] sm:$0xf]
    %v346 = vld [vmem:[#allocation7 + $0xc] sm:$0xf]
    %v347 = vld [vmem:[#allocation7 + $0x10] sm:$0xf]
    %v348 = vld [vmem:[#allocation7 + $0x14] sm:$0xf]
    %v349 = vld [vmem:[#allocation7 + $0x18] sm:$0xf]
    %v350 = vld [vmem:[#allocation7 + $0x1c] sm:$0xf]
    %v351 = vld [vmem:[#allocation7 + $0x20] sm:$0xf]
    %v352 = vld [vmem:[#allocation7 + $0x24] sm:$0xf]
    %v353 = vld [vmem:[#allocation7 + $0x28] sm:$0xf]
    %v354 = vld [vmem:[#allocation7 + $0x2c] sm:$0xf]
    %v355 = vld [vmem:[#allocation7 + $0x30] sm:$0xf]
    %v356 = vld [vmem:[#allocation7 + $0x34] sm:$0xf]
    %v357 = vld [vmem:[#allocation7 + $0x38] sm:$0xf]
    %v358 = vld [vmem:[#allocation7 + $0x3c] sm:$0xf]
    %v359 = vld [vmem:[%s6] sm:$0x1]
    %v361 = vlaneseq
    %v362 = vshrl.u32 %v361, 7
    %v363 = vsub.s32 0, %v362
    %v364 = vrot.slane %v359, %v363
    %v382 = vunpack.c.l.b16 %v343
    %v383 = vunpack.c.l.b16 %v344
    %v384 = vunpack.c.l.b16 %v345
    %v385 = vunpack.c.l.b16 %v346
    %v386 = vunpack.c.l.b16 %v347
    %v387 = vunpack.c.l.b16 %v348
    %v388 = vunpack.c.l.b16 %v349
    %v389 = vunpack.c.l.b16 %v350
    %v390 = vunpack.c.l.b16 %v351
    %v391 = vunpack.c.l.b16 %v352
    %v392 = vunpack.c.l.b16 %v353
    %v393 = vunpack.c.l.b16 %v354
    %v394 = vunpack.c.l.b16 %v355
    %v395 = vunpack.c.l.b16 %v356
    %v396 = vunpack.c.l.b16 %v357
    %v397 = vunpack.c.l.b16 %v358
    %v398 = vpack.c.b16 %v383, %v382
    %v399 = vpack.c.b16 %v385, %v384
    %v400 = vpack.c.b16 %v387, %v386
    %v401 = vpack.c.b16 %v389, %v388
    %v402 = vpack.c.b16 %v391, %v390
    %v403 = vpack.c.b16 %v393, %v392
    %v404 = vpack.c.b16 %v395, %v394
    %v405 = vpack.c.b16 %v397, %v396
    %414 = vmatprep.subr.bf16.mxu0 0
    %415 = vmatpush1.bf16.msra.mxu0 %v405
    %416 = vmatprep.subr.bf16.mxu0 0
    %417 = vmatpush1.bf16.msra.mxu0 %v404
    %418 = vmatprep.subr.bf16.mxu0 0
    %419 = vmatpush1.bf16.msra.mxu0 %v403
    %420 = vmatprep.subr.bf16.mxu0 0
    %421 = vmatpush1.bf16.msra.mxu0 %v402
    %422 = vmatprep.subr.bf16.mxu0 0
    %423 = vmatpush1.bf16.msra.mxu0 %v401
    %424 = vmatprep.subr.bf16.mxu0 0
    %425 = vmatpush1.bf16.msra.mxu0 %v400
    %426 = vmatprep.subr.bf16.mxu0 0
    %427 = vmatpush1.bf16.msra.mxu0 %v399
    %428 = vmatprep.subr.bf16.mxu0 0
    %429 = vmatpush1.bf16.msra.mxu0 %v398
    %430 = vmatprep.subr.bf16.mxu0 0
    %431 = vmatpush2.bf16.msra.mxu0 0
    %432 = vmatprep.subr.bf16.mxu0 0
    %433 = vmatpush2.bf16.msra.mxu0 0
    %434 = vmatprep.subr.bf16.mxu0 0
    %435 = vmatpush2.bf16.msra.mxu0 0
    %436 = vmatprep.subr.bf16.mxu0 0
    %437 = vmatpush2.bf16.msra.mxu0 0
    %438 = vmatprep.subr.bf16.mxu0 0
    %439 = vmatpush2.bf16.msra.mxu0 0
    %440 = vmatprep.subr.bf16.mxu0 0
    %441 = vmatpush2.bf16.msra.mxu0 0
    %442 = vmatprep.subr.bf16.mxu0 0
    %443 = vmatpush2.bf16.msra.mxu0 0
    %444 = vmatprep.subr.bf16.mxu0 0
    %445 = vmatpush2.bf16.msra.mxu0 0
    %446 = vmatprep.mubr.bf16.mxu0 0
    %447 = vmatmul.mubr.bf16.gmra.mxu0 %v342
    %v448 = vpop.f32.mrf.mxu0
    %v449 = vadd.f32 %v364, %v448
    %v450 = vpop.f32.mrf.mxu0
    %v451 = vpop.f32.mrf.mxu0
    %v452 = vpop.f32.mrf.mxu0
    %453 = vdwg.mxu0
    %454 = vst [vmem:[#allocation8] sm:$0xff] %v449
    // Predicated region
    $region42: #{forward.1} parent=1 // pred_check
      _
    $region43: #{forward.1} parent=1 // pred_check_branch
      %456 = sbr.rel (0) target = $region45
    $region44: #{forward.1} parent=1 // pred_region
      %s458 = ssub.s32 128, 128
      %459 = vsyncadd [#allocation4], %s458
      %s461 = sshll.u32 [#allocation8], 4
      %s462 = int_to_ptr.vmem [resolvable:$true] %s461
      %464 = dma.vmem_to_hbm [thread:$0]  %s462, 128, %s7, [#allocation4]
    $region45: #{forward.1} parent=1 // pred_fallthru
      _
    // Predicated region
    $region46: #{forward.1} parent=1 // pred_check
      _
    $region47: #{forward.1} parent=1 // pred_check_branch
      %466 = sbr.rel (0) target = $region49
    $region48: #{forward.1} parent=1 // pred_region
      %467 = dma.done [#allocation4], 128
    $region49: #{forward.1} parent=1 // pred_fallthru
      _
    %468 = vsyncpa [#allocation3], 1
    %469 = vsyncpa [#allocation6], 1
    %470 = vsyncpa [#allocation4], 1

</llo_original>
